<compile_context>
chip_gen: v5e
topology: v5e:2x2
jax: 0.10.0
libtpu: 0.0.40
codegen_flags: <defaults>
</compile_context>

<pallas_src>
import jax
import jax.numpy as jnp
from jax.experimental import pallas as pl
from jax.experimental.pallas import tpu as pltpu


def mlp_kernel(x_ref,
               w1_ref, b1_ref,
               w2_ref, b2_ref,
               w3_ref, b3_ref,
               w4_ref, b4_ref,
               o_ref):
    """Fused 4-layer MLP for one batch tile.

    Weights are pre-transposed to (in, out) and zero-padded to 128-lane
    multiples (done once in prepare_params); biases are f32 (1, out).
    Matmuls accumulate in f32 on the MXU; the bias add is f32; activations
    are downcast to the operand dtype and ReLU'd in that dtype.
    """
    wdt = w1_ref.dtype
    zero = jnp.zeros((), dtype=wdt)

    h = x_ref[...].astype(wdt)  # in-kernel cast; x DMA'd at native width/dtype
    h = jnp.dot(h, w1_ref[...], preferred_element_type=jnp.float32) + b1_ref[...]
    h = jnp.maximum(h.astype(wdt), zero)

    h = jnp.dot(h, w2_ref[...], preferred_element_type=jnp.float32) + b2_ref[...]
    h = jnp.maximum(h.astype(wdt), zero)

    h = jnp.dot(h, w3_ref[...], preferred_element_type=jnp.float32) + b3_ref[...]
    h = jnp.maximum(h.astype(wdt), zero)

    y = jnp.dot(h, w4_ref[...], preferred_element_type=jnp.float32) + b4_ref[...]
    o_ref[...] = y.astype(o_ref.dtype)


def _round_up(n, m):
    return ((n + m - 1) // m) * m


def _pad2d(a, rows, cols):
    return jnp.pad(a, ((0, rows - a.shape[0]), (0, cols - a.shape[1])))


def prepare_params(params, *, dtype=jnp.bfloat16):
    """One-time preprocessing of PyTorch-layout params (w: (out,in), b: (out,)).

    Transposes weights to (in, out), zero-pads every matmul N dim (and the
    hidden contraction dims that must match them) to a multiple of 128 lanes,
    casts operands to `dtype` (bf16 by default: full-rate MXU on all TPU
    generations), and keeps biases in f32. Call once and reuse the result for
    every forward call.
    """
    w1, b1 = params["w1"], params["b1"]
    w2, b2 = params["w2"], params["b2"]
    w3, b3 = params["w3"], params["b3"]
    w4, b4 = params["w4"], params["b4"]

    n_feature = w1.shape[1]
    n_output = w4.shape[0]
    d1 = _round_up(w1.shape[0], 128)
    d2 = _round_up(w2.shape[0], 128)
    d3 = _round_up(w3.shape[0], 128)
    d4 = _round_up(n_output, 128)

    prep = {
        # First layer keeps its true input width (Mosaic pads the contraction
        # dim in-vreg) so x never needs a padded copy.
        "w1": _pad2d(w1.T, n_feature, d1).astype(dtype),
        "w2": _pad2d(w2.T, d1, d2).astype(dtype),
        "w3": _pad2d(w3.T, d2, d3).astype(dtype),
        "w4": _pad2d(w4.T, d3, d4).astype(dtype),
        "b1": jnp.pad(b1, (0, d1 - b1.shape[0])).reshape(1, d1).astype(jnp.float32),
        "b2": jnp.pad(b2, (0, d2 - b2.shape[0])).reshape(1, d2).astype(jnp.float32),
        "b3": jnp.pad(b3, (0, d3 - b3.shape[0])).reshape(1, d3).astype(jnp.float32),
        "b4": jnp.pad(b4, (0, d4 - b4.shape[0])).reshape(1, d4).astype(jnp.float32),
        "n_feature": n_feature,
        "n_output": n_output,
    }
    # Materialize on device now so the cost is paid exactly once.
    return jax.tree_util.tree_map(
        lambda a: jax.device_put(a) if isinstance(a, jnp.ndarray) else a, prep)


def mlp_forward(x, prep, *, tile_b=None, out_dtype=None):
    """x: (B, n_feature). prep: output of prepare_params. Returns (B, n_output)."""
    B, n_feature = x.shape
    assert n_feature == prep["n_feature"], "feature dim mismatch with prepared params"
    n_output = prep["n_output"]
    d4 = prep["w4"].shape[1]
    out_dtype = out_dtype if out_dtype is not None else x.dtype

    # ---- batch tiling ----
    # Small B: one tile (overhead-dominated regime).
    # Large B: <=1024-row tiles AND >=2 grid steps so v7x's two TensorCores
    # both get work on the "parallel" axis; ~85% of HBM roofline at 512+ rows.
    if tile_b is None:
        b_r = _round_up(B, 8)
        if b_r <= 128:
            tile_b = b_r
        else:
            tile_b = min(_round_up((b_r + 1) // 2, 8), 1024)
    tile_b = max(8, _round_up(tile_b, 8))
    B_pad = _round_up(B, tile_b)
    # Only copy x if the batch actually needs padding (no feature-dim pad).
    x_p = x if B_pad == B else jnp.pad(x, ((0, B_pad - B), (0, 0)))

    grid = (B_pad // tile_b,)

    def full(arr):
        # Full-array resident block, identical at every grid step.
        return pl.BlockSpec(arr.shape, lambda i: (0, 0))

    out_padded = pl.pallas_call(
        mlp_kernel,
        out_shape=jax.ShapeDtypeStruct((B_pad, d4), out_dtype),
        grid_spec=pltpu.PrefetchScalarGridSpec(
            num_scalar_prefetch=0,
            grid=grid,
            in_specs=[
                # x tile at its TRUE feature width (full last dim is legal).
                pl.BlockSpec((tile_b, n_feature), lambda i: (i, 0)),
                full(prep["w1"]), full(prep["b1"]),
                full(prep["w2"]), full(prep["b2"]),
                full(prep["w3"]), full(prep["b3"]),
                full(prep["w4"]), full(prep["b4"]),
            ],
            out_specs=pl.BlockSpec((tile_b, d4), lambda i: (i, 0)),
        ),
        compiler_params=pltpu.CompilerParams(
            dimension_semantics=("parallel",)),
    )(x_p,
      prep["w1"], prep["b1"],
      prep["w2"], prep["b2"],
      prep["w3"], prep["b3"],
      prep["w4"], prep["b4"])

    return out_padded[:B, :n_output]


def init_params(key, n_feature, n_hidden, n_hidden2, n_hidden3, n_output):
    """Deterministic init matching the PyTorch module's parameter shapes
    (Linear weight: (out, in), bias: (out,))."""
    dims = [(n_hidden, n_feature), (n_hidden2, n_hidden),
            (n_hidden3, n_hidden2), (n_output, n_hidden3)]
    params = {}
    for idx, (out_d, in_d) in enumerate(dims, start=1):
        key, kw, kb = jax.random.split(key, 3)
        bound = 1.0 / jnp.sqrt(in_d)
        params[f"w{idx}"] = jax.random.uniform(
            kw, (out_d, in_d), jnp.float32, -bound, bound)
        params[f"b{idx}"] = jax.random.uniform(
            kb, (out_d,), jnp.float32, -bound, bound)
    return params


def mlp_reference(x, p):
    h = jnp.maximum(x @ p["w1"].T + p["b1"], 0.0)
    h = jnp.maximum(h @ p["w2"].T + p["b2"], 0.0)
    h = jnp.maximum(h @ p["w3"].T + p["b3"], 0.0)
    return h @ p["w4"].T + p["b4"]


if __name__ == "__main__":
    # Small shapes consistent with the module's forward pass.
    batch = 16
    n_feature, n_hidden, n_hidden2, n_hidden3, n_output = 16, 32, 64, 32, 4

    key = jax.random.PRNGKey(0)
    key, kx = jax.random.split(key)
    x = jax.random.normal(kx, (batch, n_feature), jnp.float32)
    params = init_params(key, n_feature, n_hidden, n_hidden2, n_hidden3, n_output)

    ref = mlp_reference(x, params)

    # f32 operand path (exact against the f32 reference).
    prep_f32 = prepare_params(params, dtype=jnp.float32)
    out = jax.block_until_ready(mlp_forward(x, prep_f32))
    assert out.shape == (batch, n_output)
    assert jnp.allclose(out, ref, atol=1e-4, rtol=1e-4), "f32 mismatch vs reference"

    # Default path: bf16 operands (full-rate MXU on v5e/v6e/v7x), f32 accumulation.
    prep = prepare_params(params)  # bf16 by default, built ONCE and reused
    out_bf16 = jax.block_until_ready(mlp_forward(x, prep))
    assert out_bf16.shape == (batch, n_output)
    assert jnp.allclose(out_bf16, ref, atol=1e-1, rtol=1e-1), "bf16 mismatch vs reference"

    print("KERNEL_OK")
</pallas_src>

<mosaic_0001>
module attributes {stable_mosaic.version = 11 : i64} {
  func.func @mlp_kernel(%arg0: i32, %arg1: memref<16x16xf32, #tpu.memory_space<vmem>>, %arg2: memref<16x128xf32, #tpu.memory_space<vmem>>, %arg3: memref<1x128xf32, #tpu.memory_space<vmem>>, %arg4: memref<128x128xf32, #tpu.memory_space<vmem>>, %arg5: memref<1x128xf32, #tpu.memory_space<vmem>>, %arg6: memref<128x128xf32, #tpu.memory_space<vmem>>, %arg7: memref<1x128xf32, #tpu.memory_space<vmem>>, %arg8: memref<128x128xf32, #tpu.memory_space<vmem>>, %arg9: memref<1x128xf32, #tpu.memory_space<vmem>>, %arg10: memref<16x128xf32, #tpu.memory_space<vmem>>) attributes {dimension_semantics = [#tpu.dimension_semantics<parallel>], iteration_bounds = array<i64: 1>, scalar_prefetch = 0 : i64, scratch_operands = 0 : i64, tpu.core_type = #tpu.core_type<tc>, window_params = [{transform_indices = @transform_0, window_bounds = array<i64: 16, 16>}, {pipeline_mode = #tpu.pipeline_mode<synchronous>, transform_indices = @transform_1, window_bounds = array<i64: 16, 128>}, {pipeline_mode = #tpu.pipeline_mode<synchronous>, transform_indices = @transform_2, window_bounds = array<i64: 1, 128>}, {pipeline_mode = #tpu.pipeline_mode<synchronous>, transform_indices = @transform_3, window_bounds = array<i64: 128, 128>}, {pipeline_mode = #tpu.pipeline_mode<synchronous>, transform_indices = @transform_4, window_bounds = array<i64: 1, 128>}, {pipeline_mode = #tpu.pipeline_mode<synchronous>, transform_indices = @transform_5, window_bounds = array<i64: 128, 128>}, {pipeline_mode = #tpu.pipeline_mode<synchronous>, transform_indices = @transform_6, window_bounds = array<i64: 1, 128>}, {pipeline_mode = #tpu.pipeline_mode<synchronous>, transform_indices = @transform_7, window_bounds = array<i64: 128, 128>}, {pipeline_mode = #tpu.pipeline_mode<synchronous>, transform_indices = @transform_8, window_bounds = array<i64: 1, 128>}, {transform_indices = @transform_9, window_bounds = array<i64: 16, 128>}]} {
    %c0 = arith.constant 0 : index
    %c0_0 = arith.constant 0 : index
    %0 = vector.load %arg1[%c0, %c0_0] : memref<16x16xf32, #tpu.memory_space<vmem>>, vector<16x16xf32>
    %c0_1 = arith.constant 0 : index
    %c0_2 = arith.constant 0 : index
    %1 = vector.load %arg2[%c0_1, %c0_2] : memref<16x128xf32, #tpu.memory_space<vmem>>, vector<16x128xf32>
    %cst = arith.constant dense<0.000000e+00> : vector<16x128xf32>
    %2 = tpu.matmul %0, %1, %cst {dimension_numbers = #tpu.dot_dimension_numbers<[1], [0], [0], [1], [0, 0, 1, 1], [], []>} : vector<16x16xf32>, vector<16x128xf32>, vector<16x128xf32> -> vector<16x128xf32>
    %c0_3 = arith.constant 0 : index
    %c0_4 = arith.constant 0 : index
    %3 = vector.load %arg3[%c0_3, %c0_4] : memref<1x128xf32, #tpu.memory_space<vmem>>, vector<1x128xf32>
    %4 = vector.broadcast %3 : vector<1x128xf32> to vector<16x128xf32>
    %5 = arith.addf %2, %4 : vector<16x128xf32>
    %cst_5 = arith.constant 0.000000e+00 : f32
    %6 = vector.broadcast %cst_5 : f32 to vector<16x128xf32>
    %7 = arith.maximumf %5, %6 : vector<16x128xf32>
    %c0_6 = arith.constant 0 : index
    %c0_7 = arith.constant 0 : index
    %8 = vector.load %arg4[%c0_6, %c0_7] : memref<128x128xf32, #tpu.memory_space<vmem>>, vector<128x128xf32>
    %cst_8 = arith.constant dense<0.000000e+00> : vector<16x128xf32>
    %9 = tpu.matmul %7, %8, %cst_8 {dimension_numbers = #tpu.dot_dimension_numbers<[1], [0], [0], [1], [0, 0, 1, 1], [], []>} : vector<16x128xf32>, vector<128x128xf32>, vector<16x128xf32> -> vector<16x128xf32>
    %c0_9 = arith.constant 0 : index
    %c0_10 = arith.constant 0 : index
    %10 = vector.load %arg5[%c0_9, %c0_10] : memref<1x128xf32, #tpu.memory_space<vmem>>, vector<1x128xf32>
    %11 = vector.broadcast %10 : vector<1x128xf32> to vector<16x128xf32>
    %12 = arith.addf %9, %11 : vector<16x128xf32>
    %cst_11 = arith.constant 0.000000e+00 : f32
    %13 = vector.broadcast %cst_11 : f32 to vector<16x128xf32>
    %14 = arith.maximumf %12, %13 : vector<16x128xf32>
    %c0_12 = arith.constant 0 : index
    %c0_13 = arith.constant 0 : index
    %15 = vector.load %arg6[%c0_12, %c0_13] : memref<128x128xf32, #tpu.memory_space<vmem>>, vector<128x128xf32>
    %cst_14 = arith.constant dense<0.000000e+00> : vector<16x128xf32>
    %16 = tpu.matmul %14, %15, %cst_14 {dimension_numbers = #tpu.dot_dimension_numbers<[1], [0], [0], [1], [0, 0, 1, 1], [], []>} : vector<16x128xf32>, vector<128x128xf32>, vector<16x128xf32> -> vector<16x128xf32>
    %c0_15 = arith.constant 0 : index
    %c0_16 = arith.constant 0 : index
    %17 = vector.load %arg7[%c0_15, %c0_16] : memref<1x128xf32, #tpu.memory_space<vmem>>, vector<1x128xf32>
    %18 = vector.broadcast %17 : vector<1x128xf32> to vector<16x128xf32>
    %19 = arith.addf %16, %18 : vector<16x128xf32>
    %cst_17 = arith.constant 0.000000e+00 : f32
    %20 = vector.broadcast %cst_17 : f32 to vector<16x128xf32>
    %21 = arith.maximumf %19, %20 : vector<16x128xf32>
    %c0_18 = arith.constant 0 : index
    %c0_19 = arith.constant 0 : index
    %22 = vector.load %arg8[%c0_18, %c0_19] : memref<128x128xf32, #tpu.memory_space<vmem>>, vector<128x128xf32>
    %cst_20 = arith.constant dense<0.000000e+00> : vector<16x128xf32>
    %23 = tpu.matmul %21, %22, %cst_20 {dimension_numbers = #tpu.dot_dimension_numbers<[1], [0], [0], [1], [0, 0, 1, 1], [], []>} : vector<16x128xf32>, vector<128x128xf32>, vector<16x128xf32> -> vector<16x128xf32>
    %c0_21 = arith.constant 0 : index
    %c0_22 = arith.constant 0 : index
    %24 = vector.load %arg9[%c0_21, %c0_22] : memref<1x128xf32, #tpu.memory_space<vmem>>, vector<1x128xf32>
    %25 = vector.broadcast %24 : vector<1x128xf32> to vector<16x128xf32>
    %26 = arith.addf %23, %25 : vector<16x128xf32>
    %c0_23 = arith.constant 0 : index
    %c0_24 = arith.constant 0 : index
    %27 = vector.load %arg10[%c0_23, %c0_24] : memref<16x128xf32, #tpu.memory_space<vmem>>, vector<16x128xf32>
    tpu.vector_store %arg10[%c0_23, %c0_24], %26 {strides = array<i32>} : memref<16x128xf32, #tpu.memory_space<vmem>>, vector<16x128xf32>,
    return
  }
  func.func @transform_0(%arg0: i32) -> (i32, i32) {
    %c0_i32 = arith.constant 0 : i32
    %c0_i32_0 = arith.constant 0 : i32
    return %arg0, %c0_i32 : i32, i32
  }
  func.func @transform_1(%arg0: i32) -> (i32, i32) {
    %c0_i32 = arith.constant 0 : i32
    %c0_i32_0 = arith.constant 0 : i32
    %c0_i32_1 = arith.constant 0 : i32
    return %c0_i32, %c0_i32_0 : i32, i32
  }
  func.func @transform_2(%arg0: i32) -> (i32, i32) {
    %c0_i32 = arith.constant 0 : i32
    %c0_i32_0 = arith.constant 0 : i32
    %c0_i32_1 = arith.constant 0 : i32
    return %c0_i32, %c0_i32_0 : i32, i32
  }
  func.func @transform_3(%arg0: i32) -> (i32, i32) {
    %c0_i32 = arith.constant 0 : i32
    %c0_i32_0 = arith.constant 0 : i32
    %c0_i32_1 = arith.constant 0 : i32
    return %c0_i32, %c0_i32_0 : i32, i32
  }
  func.func @transform_4(%arg0: i32) -> (i32, i32) {
    %c0_i32 = arith.constant 0 : i32
    %c0_i32_0 = arith.constant 0 : i32
    %c0_i32_1 = arith.constant 0 : i32
    return %c0_i32, %c0_i32_0 : i32, i32
  }
  func.func @transform_5(%arg0: i32) -> (i32, i32) {
    %c0_i32 = arith.constant 0 : i32
    %c0_i32_0 = arith.constant 0 : i32
    %c0_i32_1 = arith.constant 0 : i32
    return %c0_i32, %c0_i32_0 : i32, i32
  }
  func.func @transform_6(%arg0: i32) -> (i32, i32) {
    %c0_i32 = arith.constant 0 : i32
    %c0_i32_0 = arith.constant 0 : i32
    %c0_i32_1 = arith.constant 0 : i32
    return %c0_i32, %c0_i32_0 : i32, i32
  }
  func.func @transform_7(%arg0: i32) -> (i32, i32) {
    %c0_i32 = arith.constant 0 : i32
    %c0_i32_0 = arith.constant 0 : i32
    %c0_i32_1 = arith.constant 0 : i32
    return %c0_i32, %c0_i32_0 : i32, i32
  }
  func.func @transform_8(%arg0: i32) -> (i32, i32) {
    %c0_i32 = arith.constant 0 : i32
    %c0_i32_0 = arith.constant 0 : i32
    %c0_i32_1 = arith.constant 0 : i32
    return %c0_i32, %c0_i32_0 : i32, i32
  }
  func.func @transform_9(%arg0: i32) -> (i32, i32) {
    %c0_i32 = arith.constant 0 : i32
    %c0_i32_0 = arith.constant 0 : i32
    return %arg0, %c0_i32 : i32, i32
  }
}

</mosaic_0001>

<llo_original>
// kernel: tpu_custom_call.1
$region0: #{tpu_custom_call.1}
  #allocation0 [shape = 'u32[]', space=smem, size = 0x4, offset = 0x4, fixed_abs, tag = 'smem constant byte address 0x4 - core index']
  #allocation1 [shape = 'u32[72,128]{1,0:T(1,128)}', space=vmem, size = 0x9000, scoped, tag = 'internal scratch']
  %s0 = inlined_call_operand.hbm [shape: f32[16,16], index: 0, kind: input, shape index: {}]
  %s1 = inlined_call_operand.hbm [shape: f32[16,128], index: 1, kind: input, shape index: {}]
  %s2 = inlined_call_operand.vmem [shape: f32[1,128], index: 2, kind: input, shape index: {}]
  %s3 = inlined_call_operand.hbm [shape: f32[128,128], index: 3, kind: input, shape index: {}]
  %s4 = inlined_call_operand.vmem [shape: f32[1,128], index: 4, kind: input, shape index: {}]
  %s5 = inlined_call_operand.hbm [shape: f32[128,128], index: 5, kind: input, shape index: {}]
  %s6 = inlined_call_operand.vmem [shape: f32[1,128], index: 6, kind: input, shape index: {}]
  %s7 = inlined_call_operand.hbm [shape: f32[128,128], index: 7, kind: input, shape index: {}]
  %s8 = inlined_call_operand.vmem [shape: f32[1,128], index: 8, kind: input, shape index: {}]
  %s9 = inlined_call_operand.hbm [shape: f32[16,128], index: 9, kind: output, shape index: {}]
  %s10 = sld [smem:[#allocation0]]
  $region66: #{tpu_custom_call.1} parent=0
    _
  %s12 = ssub.s32 1, %s10
  %s13 = scalar_select 0, %s12, %s10
  $region1: #{tpu_custom_call.1} parent=0
    #allocation2 [shape = 'u8[8192]{0}', space=vmem, size = 0x2000, scoped, tag = 'input window, operand 0, single buffered']
    #allocation3 [shape = 's32[1]{0}', space=sflag, size = 0x4, scoped, tag = 'scoped memory for tpu_custom_call.1']
    #allocation4 [shape = 's32[1]{0}', space=sflag, size = 0x4, scoped, tag = 'scoped memory for tpu_custom_call.1']
    #allocation5 [shape = 'u8[8192]{0}', space=vmem, size = 0x2000, scoped, tag = 'input window, operand 1, single buffered']
    #allocation6 [shape = 's32[1]{0}', space=sflag, size = 0x4, scoped, tag = 'scoped memory for tpu_custom_call.1']
    #allocation7 [shape = 'u8[65536]{0}', space=vmem, size = 0x10000, scoped, tag = 'input window, operand 3, single buffered']
    #allocation8 [shape = 'u8[65536]{0}', space=vmem, size = 0x10000, scoped, tag = 'input window, operand 5, single buffered']
    #allocation9 [shape = 's32[1]{0}', space=sflag, size = 0x4, scoped, tag = 'scoped memory for tpu_custom_call.1']
    #allocation10 [shape = 'u8[65536]{0}', space=vmem, size = 0x10000, scoped, tag = 'input window, operand 7, single buffered']
    #allocation11 [shape = 'u8[8192]{0}', space=vmem, size = 0x2000, scoped, tag = 'output window, operand 0, single buffered']
    %14 = vsyncpa [#allocation3], 0
    %15 = vsyncpa [#allocation6], 0
    %16 = vsyncpa [#allocation9], 0
    %17 = vsyncpa [#allocation4], 0
    // Predicated region
    $region2: #{tpu_custom_call.1} parent=1 // pred_check
      _
    $region3: #{tpu_custom_call.1} parent=1 // pred_check_branch
      %19 = sbr.rel (0) target = $region5
    $region4: #{tpu_custom_call.1} parent=1 // pred_region
      %21 = vsyncadd [#allocation3], 0
      %s22 = sshll.u32 %s0, 4
      %s23 = int_to_ptr.hbm [resolvable:$true] %s22
      %s24 = sshll.u32 [#allocation2], 4
      %s25 = int_to_ptr.vmem [resolvable:$true] %s24
      %30 = dma.hbm_to_vmem [thread:$0]  %s23, 256, %s25, [#allocation3], 128, 128, 8
    $region5: #{tpu_custom_call.1} parent=1 // pred_fallthru
      _
    // Predicated region
    $region6: #{tpu_custom_call.1} parent=1 // pred_check
      _
    $region7: #{tpu_custom_call.1} parent=1 // pred_check_branch
      %32 = sbr.rel (0) target = $region9
    $region8: #{tpu_custom_call.1} parent=1 // pred_region
      %34 = vsyncadd [#allocation6], 0
      %s35 = sshll.u32 %s1, 4
      %s36 = int_to_ptr.hbm [resolvable:$true] %s35
      %s37 = sshll.u32 [#allocation5], 4
      %s38 = int_to_ptr.vmem [resolvable:$true] %s37
      %43 = dma.hbm_to_vmem [thread:$0]  %s36, 256, %s38, [#allocation6], 128, 128, 8
    $region9: #{tpu_custom_call.1} parent=1 // pred_fallthru
      _
    // Predicated region
    $region10: #{tpu_custom_call.1} parent=1 // pred_check
      _
    $region11: #{tpu_custom_call.1} parent=1 // pred_check_branch
      %45 = sbr.rel (0) target = $region13
    $region12: #{tpu_custom_call.1} parent=1 // pred_region
      _
    $region13: #{tpu_custom_call.1} parent=1 // pred_fallthru
      _
    // Predicated region
    $region14: #{tpu_custom_call.1} parent=1 // pred_check
      _
    $region15: #{tpu_custom_call.1} parent=1 // pred_check_branch
      %47 = sbr.rel (0) target = $region17
    $region16: #{tpu_custom_call.1} parent=1 // pred_region
      %49 = vsyncadd [#allocation6], 0
      %s50 = sshll.u32 %s3, 4
      %s51 = int_to_ptr.hbm [resolvable:$true] %s50
      %s52 = sshll.u32 [#allocation7], 4
      %s53 = int_to_ptr.vmem [resolvable:$true] %s52
      %58 = dma.hbm_to_vmem [thread:$0]  %s51, 2048, %s53, [#allocation6], 128, 128, 8
    $region17: #{tpu_custom_call.1} parent=1 // pred_fallthru
      _
    // Predicated region
    $region18: #{tpu_custom_call.1} parent=1 // pred_check
      _
    $region19: #{tpu_custom_call.1} parent=1 // pred_check_branch
      %60 = sbr.rel (0) target = $region21
    $region20: #{tpu_custom_call.1} parent=1 // pred_region
      _
    $region21: #{tpu_custom_call.1} parent=1 // pred_fallthru
      _
    // Predicated region
    $region22: #{tpu_custom_call.1} parent=1 // pred_check
      _
    $region23: #{tpu_custom_call.1} parent=1 // pred_check_branch
      %62 = sbr.rel (0) target = $region25
    $region24: #{tpu_custom_call.1} parent=1 // pred_region
      %64 = vsyncadd [#allocation9], 0
      %s65 = sshll.u32 %s5, 4
      %s66 = int_to_ptr.hbm [resolvable:$true] %s65
      %s67 = sshll.u32 [#allocation8], 4
      %s68 = int_to_ptr.vmem [resolvable:$true] %s67
      %73 = dma.hbm_to_vmem [thread:$0]  %s66, 2048, %s68, [#allocation9], 128, 128, 8
    $region25: #{tpu_custom_call.1} parent=1 // pred_fallthru
      _
    // Predicated region
    $region26: #{tpu_custom_call.1} parent=1 // pred_check
      _
    $region27: #{tpu_custom_call.1} parent=1 // pred_check_branch
      %75 = sbr.rel (0) target = $region29
    $region28: #{tpu_custom_call.1} parent=1 // pred_region
      _
    $region29: #{tpu_custom_call.1} parent=1 // pred_fallthru
      _
    // Predicated region
    $region30: #{tpu_custom_call.1} parent=1 // pred_check
      _
    $region31: #{tpu_custom_call.1} parent=1 // pred_check_branch
      %77 = sbr.rel (0) target = $region33
    $region32: #{tpu_custom_call.1} parent=1 // pred_region
      %79 = vsyncadd [#allocation9], 0
      %s80 = sshll.u32 %s7, 4
      %s81 = int_to_ptr.hbm [resolvable:$true] %s80
      %s82 = sshll.u32 [#allocation10], 4
      %s83 = int_to_ptr.vmem [resolvable:$true] %s82
      %88 = dma.hbm_to_vmem [thread:$0]  %s81, 2048, %s83, [#allocation9], 128, 128, 8
    $region33: #{tpu_custom_call.1} parent=1 // pred_fallthru
      _
    // Predicated region
    $region34: #{tpu_custom_call.1} parent=1 // pred_check
      _
    $region35: #{tpu_custom_call.1} parent=1 // pred_check_branch
      %90 = sbr.rel (0) target = $region37
    $region36: #{tpu_custom_call.1} parent=1 // pred_region
      _
    $region37: #{tpu_custom_call.1} parent=1 // pred_fallthru
      _
    // Predicated region
    $region38: #{tpu_custom_call.1} parent=1 // pred_check
      _
    $region39: #{tpu_custom_call.1} parent=1 // pred_check_branch
      %92 = sbr.rel (0) target = $region41
    $region40: #{tpu_custom_call.1} parent=1 // pred_region
      %94 = dma.done [#allocation3], 256
    $region41: #{tpu_custom_call.1} parent=1 // pred_fallthru
      _
    // Predicated region
    $region42: #{tpu_custom_call.1} parent=1 // pred_check
      _
    $region43: #{tpu_custom_call.1} parent=1 // pred_check_branch
      %96 = sbr.rel (0) target = $region45
    $region44: #{tpu_custom_call.1} parent=1 // pred_region
      %98 = dma.done [#allocation6], 256
    $region45: #{tpu_custom_call.1} parent=1 // pred_fallthru
      _
    // Predicated region
    $region46: #{tpu_custom_call.1} parent=1 // pred_check
      _
    $region47: #{tpu_custom_call.1} parent=1 // pred_check_branch
      %100 = sbr.rel (0) target = $region49
    $region48: #{tpu_custom_call.1} parent=1 // pred_region
      %102 = dma.done [#allocation6], 2048
    $region49: #{tpu_custom_call.1} parent=1 // pred_fallthru
      _
    // Predicated region
    $region50: #{tpu_custom_call.1} parent=1 // pred_check
      _
    $region51: #{tpu_custom_call.1} parent=1 // pred_check_branch
      %104 = sbr.rel (0) target = $region53
    $region52: #{tpu_custom_call.1} parent=1 // pred_region
      %106 = dma.done [#allocation9], 2048
    $region53: #{tpu_custom_call.1} parent=1 // pred_fallthru
      _
    // Predicated region
    $region54: #{tpu_custom_call.1} parent=1 // pred_check
      _
    $region55: #{tpu_custom_call.1} parent=1 // pred_check_branch
      %108 = sbr.rel (0) target = $region57
    $region56: #{tpu_custom_call.1} parent=1 // pred_region
      %110 = dma.done [#allocation9], 2048
    $region57: #{tpu_custom_call.1} parent=1 // pred_fallthru
      _
    %v111 = vld [vmem:[#allocation2] sm:$0xff]
    %v112 = vld [vmem:[#allocation2 + $0x8] sm:$0xff]
    %v113 = vld [vmem:[#allocation5] sm:$0xff]
    %v114 = vld [vmem:[#allocation5 + $0x8] sm:$0xff]
    %v115 = vld [vmem:[%s2] sm:$0x1]
    %v117 = vperm.slane %v115, 0
    %vm119 = vcmask 130048
    %v121 = vsel %vm119, %v111, 0
    %v124 = vsel %vm119, %v112, 0
    %126 = vmatpush.msra.mxu0 0.0
    %127 = vmatpush.msra.mxu0 0.0
    %128 = vmatpush.msra.mxu0 0.0
    %129 = vmatpush.msra.mxu0 0.0
    %130 = vmatpush.msra.mxu0 0.0
    %131 = vmatpush.msra.mxu0 0.0
    %132 = vmatpush.msra.mxu0 0.0
    %133 = vmatpush.msra.mxu0 0.0
    %134 = vmatpush.msra.mxu0 0.0
    %135 = vmatpush.msra.mxu0 0.0
    %136 = vmatpush.msra.mxu0 0.0
    %137 = vmatpush.msra.mxu0 0.0
    %138 = vmatpush.msra.mxu0 0.0
    %139 = vmatpush.msra.mxu0 0.0
    %140 = vmatpush.msra.mxu0 %v114
    %141 = vmatpush.msra.mxu0 %v113
    %142 = vmatmul.f32.gmra.mxu0 %v121
    %v143 = vpop.f32.mrf.mxu0
    %v144 = vadd.f32 %v117, %v143
    %145 = vmatmul.f32.gmra.mxu0 %v124
    %v146 = vpop.f32.mrf.mxu0
    %v147 = vadd.f32 %v117, %v146
    %148 = vdwg.mxu0
    %v149 = vmax.f32 %v144, 0.0
    %v150 = vmax.f32 %v147, 0.0
    %v151 = vld [vmem:[#allocation7] sm:$0xff]
    %v152 = vld [vmem:[#allocation7 + $0x8] sm:$0xff]
    %v153 = vld [vmem:[#allocation7 + $0x10] sm:$0xff]
    %v154 = vld [vmem:[#allocation7 + $0x18] sm:$0xff]
    %v155 = vld [vmem:[#allocation7 + $0x20] sm:$0xff]
    %v156 = vld [vmem:[#allocation7 + $0x28] sm:$0xff]
    %v157 = vld [vmem:[#allocation7 + $0x30] sm:$0xff]
    %v158 = vld [vmem:[#allocation7 + $0x38] sm:$0xff]
    %v159 = vld [vmem:[#allocation7 + $0x40] sm:$0xff]
    %v160 = vld [vmem:[#allocation7 + $0x48] sm:$0xff]
    %v161 = vld [vmem:[#allocation7 + $0x50] sm:$0xff]
    %v162 = vld [vmem:[#allocation7 + $0x58] sm:$0xff]
    %v163 = vld [vmem:[#allocation7 + $0x60] sm:$0xff]
    %v164 = vld [vmem:[#allocation7 + $0x68] sm:$0xff]
    %v165 = vld [vmem:[#allocation7 + $0x70] sm:$0xff]
    %v166 = vld [vmem:[#allocation7 + $0x78] sm:$0xff]
    %v167 = vld [vmem:[%s4] sm:$0x1]
    %v169 = vperm.slane %v167, 0
    %171 = vmatpush.msra.mxu0 %v166
    %172 = vmatpush.msra.mxu0 %v165
    %173 = vmatpush.msra.mxu0 %v164
    %174 = vmatpush.msra.mxu0 %v163
    %175 = vmatpush.msra.mxu0 %v162
    %176 = vmatpush.msra.mxu0 %v161
    %177 = vmatpush.msra.mxu0 %v160
    %178 = vmatpush.msra.mxu0 %v159
    %179 = vmatpush.msra.mxu0 %v158
    %180 = vmatpush.msra.mxu0 %v157
    %181 = vmatpush.msra.mxu0 %v156
    %182 = vmatpush.msra.mxu0 %v155
    %183 = vmatpush.msra.mxu0 %v154
    %184 = vmatpush.msra.mxu0 %v153
    %185 = vmatpush.msra.mxu0 %v152
    %186 = vmatpush.msra.mxu0 %v151
    %187 = vmatmul.f32.gmra.mxu0 %v149
    %v188 = vpop.f32.mrf.mxu0
    %v189 = vadd.f32 %v169, %v188
    %190 = vmatmul.f32.gmra.mxu0 %v150
    %v191 = vpop.f32.mrf.mxu0
    %v192 = vadd.f32 %v169, %v191
    %193 = vdwg.mxu0
    %v194 = vmax.f32 %v189, 0.0
    %v195 = vmax.f32 %v192, 0.0
    %v196 = vld [vmem:[#allocation8] sm:$0xff]
    %v197 = vld [vmem:[#allocation8 + $0x8] sm:$0xff]
    %v198 = vld [vmem:[#allocation8 + $0x10] sm:$0xff]
    %v199 = vld [vmem:[#allocation8 + $0x18] sm:$0xff]
    %v200 = vld [vmem:[#allocation8 + $0x20] sm:$0xff]
    %v201 = vld [vmem:[#allocation8 + $0x28] sm:$0xff]
    %v202 = vld [vmem:[#allocation8 + $0x30] sm:$0xff]
    %v203 = vld [vmem:[#allocation8 + $0x38] sm:$0xff]
    %v204 = vld [vmem:[#allocation8 + $0x40] sm:$0xff]
    %v205 = vld [vmem:[#allocation8 + $0x48] sm:$0xff]
    %v206 = vld [vmem:[#allocation8 + $0x50] sm:$0xff]
    %v207 = vld [vmem:[#allocation8 + $0x58] sm:$0xff]
    %v208 = vld [vmem:[#allocation8 + $0x60] sm:$0xff]
    %v209 = vld [vmem:[#allocation8 + $0x68] sm:$0xff]
    %v210 = vld [vmem:[#allocation8 + $0x70] sm:$0xff]
    %v211 = vld [vmem:[#allocation8 + $0x78] sm:$0xff]
    %v212 = vld [vmem:[%s6] sm:$0x1]
    %v214 = vperm.slane %v212, 0
    %216 = vmatpush.msra.mxu0 %v211
    %217 = vmatpush.msra.mxu0 %v210
    %218 = vmatpush.msra.mxu0 %v209
    %219 = vmatpush.msra.mxu0 %v208
    %220 = vmatpush.msra.mxu0 %v207
    %221 = vmatpush.msra.mxu0 %v206
    %222 = vmatpush.msra.mxu0 %v205
    %223 = vmatpush.msra.mxu0 %v204
    %224 = vmatpush.msra.mxu0 %v203
    %225 = vmatpush.msra.mxu0 %v202
    %226 = vmatpush.msra.mxu0 %v201
    %227 = vmatpush.msra.mxu0 %v200
    %228 = vmatpush.msra.mxu0 %v199
    %229 = vmatpush.msra.mxu0 %v198
    %230 = vmatpush.msra.mxu0 %v197
    %231 = vmatpush.msra.mxu0 %v196
    %232 = vmatmul.f32.gmra.mxu0 %v194
    %v233 = vpop.f32.mrf.mxu0
    %v234 = vadd.f32 %v214, %v233
    %235 = vmatmul.f32.gmra.mxu0 %v195
    %v236 = vpop.f32.mrf.mxu0
    %v237 = vadd.f32 %v214, %v236
    %238 = vdwg.mxu0
    %v239 = vmax.f32 %v234, 0.0
    %v240 = vmax.f32 %v237, 0.0
    %v241 = vld [vmem:[#allocation10] sm:$0xff]
    %v242 = vld [vmem:[#allocation10 + $0x8] sm:$0xff]
    %v243 = vld [vmem:[#allocation10 + $0x10] sm:$0xff]
    %v244 = vld [vmem:[#allocation10 + $0x18] sm:$0xff]
    %v245 = vld [vmem:[#allocation10 + $0x20] sm:$0xff]
    %v246 = vld [vmem:[#allocation10 + $0x28] sm:$0xff]
    %v247 = vld [vmem:[#allocation10 + $0x30] sm:$0xff]
    %v248 = vld [vmem:[#allocation10 + $0x38] sm:$0xff]
    %v249 = vld [vmem:[#allocation10 + $0x40] sm:$0xff]
    %v250 = vld [vmem:[#allocation10 + $0x48] sm:$0xff]
    %v251 = vld [vmem:[#allocation10 + $0x50] sm:$0xff]
    %v252 = vld [vmem:[#allocation10 + $0x58] sm:$0xff]
    %v253 = vld [vmem:[#allocation10 + $0x60] sm:$0xff]
    %v254 = vld [vmem:[#allocation10 + $0x68] sm:$0xff]
    %v255 = vld [vmem:[#allocation10 + $0x70] sm:$0xff]
    %v256 = vld [vmem:[#allocation10 + $0x78] sm:$0xff]
    %v257 = vld [vmem:[%s8] sm:$0x1]
    %v259 = vperm.slane %v257, 0
    %261 = vmatpush.msra.mxu0 %v256
    %262 = vmatpush.msra.mxu0 %v255
    %263 = vmatpush.msra.mxu0 %v254
    %264 = vmatpush.msra.mxu0 %v253
    %265 = vmatpush.msra.mxu0 %v252
    %266 = vmatpush.msra.mxu0 %v251
    %267 = vmatpush.msra.mxu0 %v250
    %268 = vmatpush.msra.mxu0 %v249
    %269 = vmatpush.msra.mxu0 %v248
    %270 = vmatpush.msra.mxu0 %v247
    %271 = vmatpush.msra.mxu0 %v246
    %272 = vmatpush.msra.mxu0 %v245
    %273 = vmatpush.msra.mxu0 %v244
    %274 = vmatpush.msra.mxu0 %v243
    %275 = vmatpush.msra.mxu0 %v242
    %276 = vmatpush.msra.mxu0 %v241
    %277 = vmatmul.f32.gmra.mxu0 %v239
    %v278 = vpop.f32.mrf.mxu0
    %v279 = vadd.f32 %v259, %v278
    %280 = vmatmul.f32.gmra.mxu0 %v240
    %v281 = vpop.f32.mrf.mxu0
    %v282 = vadd.f32 %v259, %v281
    %283 = vdwg.mxu0
    %284 = vst [vmem:[#allocation11] sm:$0xff] %v279
    %285 = vst [vmem:[#allocation11 + $0x8] sm:$0xff] %v282
    // Predicated region
    $region58: #{tpu_custom_call.1} parent=1 // pred_check
      _
    $region59: #{tpu_custom_call.1} parent=1 // pred_check_branch
      %287 = sbr.rel (0) target = $region61
    $region60: #{tpu_custom_call.1} parent=1 // pred_region
      %289 = vsyncadd [#allocation4], 0
      %s290 = sshll.u32 [#allocation11], 4
      %s291 = int_to_ptr.vmem [resolvable:$true] %s290
      %s292 = sshll.u32 %s9, 4
      %s293 = int_to_ptr.hbm [resolvable:$true] %s292
      %298 = dma.vmem_to_hbm [thread:$0]  %s291, 256, %s293, [#allocation4], 128, 128, 8
    $region61: #{tpu_custom_call.1} parent=1 // pred_fallthru
      _
    // Predicated region
    $region62: #{tpu_custom_call.1} parent=1 // pred_check
      _
    $region63: #{tpu_custom_call.1} parent=1 // pred_check_branch
      %300 = sbr.rel (0) target = $region65
    $region64: #{tpu_custom_call.1} parent=1 // pred_region
      %302 = dma.done [#allocation4], 256
    $region65: #{tpu_custom_call.1} parent=1 // pred_fallthru
      _
    %303 = vsyncpa [#allocation3], 1
    %304 = vsyncpa [#allocation6], 1
    %305 = vsyncpa [#allocation9], 1
    %306 = vsyncpa [#allocation4], 1

</llo_original>
